<compile_context>
chip_gen: v6e
topology: v6e:2x2x1
jax: 0.10.0
libtpu: 0.0.40
codegen_flags: <defaults>
</compile_context>

<pallas_src>
import functools
import math

import jax
import jax.numpy as jnp
from jax.experimental import pallas as pl
from jax.experimental.pallas import tpu as pltpu


def _diffusion_embedding_kernel(x_ref, o_ref, *, half, neg_scale):
    """x_ref: (TB, 1) f32 ; o_ref: (TB, 2*half) f32."""
    dim = o_ref.shape[-1]
    x = x_ref[...]                                             # (TB, 1)

    if half % 128 == 0:
        # Lane-aligned case (dim >= 256): exact half-width sin/cos, single
        # full-width store via a 128-aligned lane concat.
        k = jax.lax.broadcasted_iota(jnp.int32, (1, half), 1).astype(jnp.float32)
        freqs = jnp.exp(k * neg_scale)                         # (1, half), O(half) EUP
        emb = x * freqs                                        # (TB, half)
        o_ref[...] = jnp.concatenate([jnp.sin(emb), jnp.cos(emb)], axis=-1)
    else:
        # dim < 256 (production dim=32): cos(t) = sin(t + pi/2).  One sin per
        # output element (half the EUP work of sin AND cos under a select) and
        # one unmasked full-width store.  freqs/phase are row-invariant
        # (1, dim) values built once per grid step, not per element.
        lane = jax.lax.broadcasted_iota(jnp.int32, (1, dim), 1)
        is_sin = lane < half
        k = jnp.where(is_sin, lane, lane - half).astype(jnp.float32)
        freqs = jnp.exp(k * neg_scale)                         # (1, dim)
        phase = jnp.where(is_sin, 0.0, math.pi / 2.0).astype(jnp.float32)
        o_ref[...] = jnp.sin(x * freqs + phase)                # (TB, dim)


def _round_up(n, m):
    return ((n + m - 1) // m) * m


def diffusion_embedding(x, dim, *, block_b=2048):
    """x: (B,) diffusion steps -> (B, dim) sinusoidal embedding (float32)."""
    assert dim % 2 == 0 and dim >= 4, "d_denoiser must be even and >= 4"
    half = dim // 2
    neg_scale = -(math.log(10000.0) / (half - 1))

    B = x.shape[0]
    B8 = _round_up(B, 8)

    # VMEM insurance: cap the per-buffer output tile at ~4 MiB (x2 for double
    # buffering) so large dim never bumps into v7x's 32 MiB scoped VMEM.
    vmem_row_cap = max(8, ((4 << 20) // (dim * 4)) // 8 * 8)
    max_tb = max(8, min(block_b, vmem_row_cap) // 8 * 8)

    # Balanced tile count; force >= 2 parallel grid steps when the batch allows
    # it so v7x's second TensorCore gets work (harmless on single-TC chips).
    num_tiles = pl.cdiv(B8, max_tb)
    if B8 >= 16:
        num_tiles = max(num_tiles, 2)
    TB = _round_up(pl.cdiv(B8, num_tiles), 8)
    grid = pl.cdiv(B8, TB)
    Bp = grid * TB

    x2d = x.astype(jnp.float32).reshape(B, 1)
    if Bp != B:
        x2d = jnp.pad(x2d, ((0, Bp - B), (0, 0)))   # padded rows sliced off below

    kernel = functools.partial(
        _diffusion_embedding_kernel, half=half, neg_scale=neg_scale
    )

    out = pl.pallas_call(
        kernel,
        out_shape=jax.ShapeDtypeStruct((Bp, dim), jnp.float32),
        grid=(grid,),
        in_specs=[pl.BlockSpec((TB, 1), lambda i: (i, 0))],
        out_specs=pl.BlockSpec((TB, dim), lambda i: (i, 0)),
        compiler_params=pltpu.CompilerParams(
            dimension_semantics=("parallel",),
        ),
    )(x2d)

    return out[:B] if Bp != B else out


def diffusion_embedding_ref(x, dim):
    """Pure-JAX reference mirroring the PyTorch forward."""
    half = dim // 2
    scale = math.log(10000.0) / (half - 1)
    freqs = jnp.exp(jnp.arange(half, dtype=jnp.float32) * -scale)
    emb = x.astype(jnp.float32)[:, None] * freqs[None, :]
    return jnp.concatenate([jnp.sin(emb), jnp.cos(emb)], axis=-1)


if __name__ == "__main__":
    key = jax.random.PRNGKey(0)

    # Tolerance note: emb arguments reach ~1e3, where a few-ulp difference in
    # the argument (ulp(1e3) ~ 6e-5) between implementations already shows up
    # at ~1e-4 abs in sin/cos; the cos-as-sin(t+pi/2) trick adds <~1e-4 more
    # (argument rounding).  1e-3 still catches any real bug (wrong freqs,
    # swapped halves, bad tiling all give O(1) errors).
    ATOL = 1e-3

    ok = True

    # Case 1: the module's typical shape (B=8 timesteps, d_denoiser=32).
    B, d_denoiser = 8, 32
    x = jax.random.uniform(key, (B,), dtype=jnp.float32, minval=0.0, maxval=1000.0)
    out = jax.block_until_ready(diffusion_embedding(x, d_denoiser))
    ref = diffusion_embedding_ref(x, d_denoiser)
    ok &= out.shape == (B, d_denoiser)
    ok &= bool(jnp.allclose(out, ref, atol=ATOL, rtol=1e-5))

    # Case 2: batch not a multiple of 8 (padding + 2-step parallel grid), dim=64.
    B2, d2 = 13, 64
    x2 = jax.random.uniform(
        jax.random.fold_in(key, 1), (B2,), dtype=jnp.float32, minval=0.0, maxval=1000.0
    )
    out2 = jax.block_until_ready(diffusion_embedding(x2, d2))
    ref2 = diffusion_embedding_ref(x2, d2)
    ok &= out2.shape == (B2, d2)
    ok &= bool(jnp.allclose(out2, ref2, atol=ATOL, rtol=1e-5))

    # Case 3: multi-step grid — small block to force grid=(3,).
    B3, d3 = 24, 32
    x3 = jax.random.uniform(
        jax.random.fold_in(key, 2), (B3,), dtype=jnp.float32, minval=0.0, maxval=1000.0
    )
    out3 = jax.block_until_ready(diffusion_embedding(x3, d3, block_b=8))
    ref3 = diffusion_embedding_ref(x3, d3)
    ok &= out3.shape == (B3, d3)
    ok &= bool(jnp.allclose(out3, ref3, atol=ATOL, rtol=1e-5))

    assert ok, "mismatch vs reference"
    print("KERNEL_OK")
</pallas_src>

<mosaic_0001>
module attributes {stable_mosaic.version = 11 : i64} {
  func.func @_diffusion_embedding_kernel(%arg0: i32, %arg1: memref<8x1xf32, #tpu.memory_space<vmem>>, %arg2: memref<8x32xf32, #tpu.memory_space<vmem>>) attributes {dimension_semantics = [#tpu.dimension_semantics<parallel>], iteration_bounds = array<i64: 1>, scalar_prefetch = 0 : i64, scratch_operands = 0 : i64, tpu.core_type = #tpu.core_type<tc>, window_params = [{transform_indices = @transform_0, window_bounds = array<i64: 8, 1>}, {transform_indices = @transform_1, window_bounds = array<i64: 8, 32>}]} {
    %c0 = arith.constant 0 : index
    %c0_0 = arith.constant 0 : index
    %0 = vector.load %arg1[%c0, %c0_0] : memref<8x1xf32, #tpu.memory_space<vmem>>, vector<8x1xf32>
    %1 = tpu.iota {dimensions = array<i32: 1>} : vector<1x32xi32>
    %c16_i32 = arith.constant 16 : i32
    %2 = vector.broadcast %c16_i32 : i32 to vector<1x32xi32>
    %3 = arith.cmpi slt, %1, %2 : vector<1x32xi32>
    %c16_i32_1 = arith.constant 16 : i32
    %4 = vector.broadcast %c16_i32_1 : i32 to vector<1x32xi32>
    %5 = arith.subi %1, %4 : vector<1x32xi32>
    %6 = arith.select %3, %1, %5 : vector<1x32xi1>, vector<1x32xi32>
    %7 = arith.sitofp %6 : vector<1x32xi32> to vector<1x32xf32>
    %cst = arith.constant -0.614022672 : f32
    %8 = vector.broadcast %cst : f32 to vector<1x32xf32>
    %9 = arith.mulf %7, %8 : vector<1x32xf32>
    %10 = math.exp %9 : vector<1x32xf32>
    %cst_2 = arith.constant 0.000000e+00 : f32
    %cst_3 = arith.constant 1.57079637 : f32
    %11 = vector.broadcast %cst_2 : f32 to vector<1x32xf32>
    %12 = vector.broadcast %cst_3 : f32 to vector<1x32xf32>
    %13 = arith.select %3, %11, %12 : vector<1x32xi1>, vector<1x32xf32>
    %14 = vector.broadcast %0 : vector<8x1xf32> to vector<8x32xf32>
    %15 = vector.broadcast %10 : vector<1x32xf32> to vector<8x32xf32>
    %16 = arith.mulf %14, %15 : vector<8x32xf32>
    %17 = vector.broadcast %13 : vector<1x32xf32> to vector<8x32xf32>
    %18 = arith.addf %16, %17 : vector<8x32xf32>
    %19 = math.sin %18 : vector<8x32xf32>
    %c0_4 = arith.constant 0 : index
    %c0_5 = arith.constant 0 : index
    %20 = vector.load %arg2[%c0_4, %c0_5] : memref<8x32xf32, #tpu.memory_space<vmem>>, vector<8x32xf32>
    tpu.vector_store %arg2[%c0_4, %c0_5], %19 {strides = array<i32>} : memref<8x32xf32, #tpu.memory_space<vmem>>, vector<8x32xf32>,
    return
  }
  func.func @transform_0(%arg0: i32) -> (i32, i32) {
    %c0_i32 = arith.constant 0 : i32
    %c0_i32_0 = arith.constant 0 : i32
    return %arg0, %c0_i32 : i32, i32
  }
  func.func @transform_1(%arg0: i32) -> (i32, i32) {
    %c0_i32 = arith.constant 0 : i32
    %c0_i32_0 = arith.constant 0 : i32
    return %arg0, %c0_i32 : i32, i32
  }
}

</mosaic_0001>

<llo_original>
// kernel: tpu_custom_call.1
$region0: #{tpu_custom_call.1}
  #allocation0 [shape = 'u32[]', space=smem, size = 0x4, offset = 0x4, fixed_abs, tag = 'smem constant byte address 0x4 - core index']
  #allocation1 [shape = 'u32[144,128]{1,0:T(1,128)}', space=vmem, size = 0x12000, scoped, tag = 'internal scratch']
  %s0 = inlined_call_operand.vmem [shape: f32[8,1], index: 0, kind: input, shape index: {}]
  %s1 = inlined_call_operand.hbm [shape: f32[8,32], index: 1, kind: output, shape index: {}]
  %s2 = sld [smem:[#allocation0]]
  $region14: #{tpu_custom_call.1} parent=0
    _
  %s4 = ssub.s32 1, %s2
  %s5 = scalar_select 0, %s4, %s2
  $region1: #{tpu_custom_call.1} parent=0
    #allocation2 [shape = 'u8[4096]{0}', space=vmem, size = 0x1000, scoped, tag = 'output window, operand 0, single buffered']
    #allocation3 [shape = 's32[1]{0}', space=sflag, size = 0x4, scoped, tag = 'scoped memory for tpu_custom_call.1']
    %6 = vsyncpa [#allocation3], 0
    // Predicated region
    $region2: #{tpu_custom_call.1} parent=1 // pred_check
      _
    $region3: #{tpu_custom_call.1} parent=1 // pred_check_branch
      %8 = sbr.rel (0) target = $region5
    $region4: #{tpu_custom_call.1} parent=1 // pred_region
      _
    $region5: #{tpu_custom_call.1} parent=1 // pred_fallthru
      _
    %v9 = vld [vmem:[%s0] sm:$0xff]
    %v10 = vlaneseq
    %v11 = vand.u32 %v10, 127
    %vm12 = vcmp.lt.s32.totalorder %v11, 16
    %v13 = vsub.s32 %v11, 16
    %v14 = vsel %vm12, %v11, %v13
    %v15 = vcvt.s32.f32 %v14
    %v16 = vmul.f32 %v15, -0.6140227
    %v17 = vmul.f32 %v16, 1.442695
    %v18 = vpow.pop %v17
    %v19 = vsel %vm12, 0.0, 1.5707964
    %21 = vset.pattern.permute.xlu0 0
    %22 = vperm.xlu0 %21, %v9
    %v23 = vpop.permute.xlu0 %22
    %v25 = vmul.f32 %v23, %v18
    %v26 = vadd.f32 %v25, %v19
    %v27 = vand.u32 2147483647, %v26
    %vm28 = vcmp.le.f32.partialorder %v27, 0.7853982
    %vm29 = vcmp.lt.s32.totalorder %v26, 0
    %v30 = vand.u32 %v26, 2139095040
    %v31 = vshrl.u32 %v30, 23
    %v32 = vsub.s32 %v31, 127
    %v33 = vand.u32 2147483647, %v26
    %v34 = vand.u32 %v33, 8388607
    %v35 = vor.u32 %v34, 8388608
    %v36 = vsub.s32 0, %v35
    %v37 = vadd.s32 %v32, 1
    %vm38 = vcmp.gt.s32.totalorder %v37, 0
    %v39 = vsel %vm38, %v37, 0
    %v40 = vshrl.u32 %v39, 5
    %v41 = vand.u32 %v39, 31
    %v42 = vsub.s32 32, %v41
    %v43 = vshrl.u32 683565275, %v42
    %v44 = vshll.u32 683565275, %v41
    %v45 = vshrl.u32 2475754826, %v42
    %v46 = vor.u32 %v44, %v45
    %v47 = vshll.u32 2475754826, %v41
    %v48 = vshrl.u32 2131351028, %v42
    %v49 = vor.u32 %v47, %v48
    %v50 = vshll.u32 2131351028, %v41
    %v51 = vshrl.u32 2102212464, %v42
    %v52 = vor.u32 %v50, %v51
    %v53 = vshll.u32 2102212464, %v41
    %v54 = vshrl.u32 920167782, %v42
    %v55 = vor.u32 %v53, %v54
    %v56 = vshll.u32 920167782, %v41
    %v57 = vshrl.u32 1326507024, %v42
    %v58 = vor.u32 %v56, %v57
    %vm59 = vcmp.lt.s32.totalorder %v40, 1
    %vm60 = vcmp.lt.s32.totalorder %v40, 2
    %vm61 = vcmp.lt.s32.totalorder %v40, 3
    %vm62 = vcmp.lt.s32.totalorder %v40, 4
    %v63 = vsel %vm59, %v43, %v46
    %v64 = vsel %vm62, %v52, 2102212464
    %v65 = vsel %vm61, %v49, %v64
    %v66 = vsel %vm60, %v63, %v65
    %v67 = vsel %vm59, %v46, %v49
    %v68 = vsel %vm62, %v55, 920167782
    %v69 = vsel %vm61, %v52, %v68
    %v70 = vsel %vm60, %v67, %v69
    %v71 = vsel %vm59, %v49, %v52
    %v72 = vsel %vm62, %v58, 1326507024
    %v73 = vsel %vm61, %v55, %v72
    %v74 = vsel %vm60, %v71, %v73
    %v75 = vshll.u32 %v35, 8
    %v76 = vmul.u32.u64.compose %v75, %v74
    %v77 = vextract.low.u32 %v76
    %v78 = vextract.high.u32 %v76
    %v79 = vmul.u32.u64.compose %v75, %v70
    %v80 = vextract.low.u32 %v79
    %v81 = vextract.high.u32 %v79
    %v82 = vmul.u32 %v75, %v66
    %v83 = vadd.s32 %v78, %v80
    %vm84 = vc.u32 %v78, %v80
    %v85 = vadd.s32 %v81, 1
    %v86 = vsel %vm84, %v85, %v81
    %v87 = vadd.s32 %v82, %v86
    %v88 = vadd.s32 %v87, 536870912
    %v89 = vshrl.u32 %v88, 30
    %v90 = vshll.u32 %v89, 30
    %v91 = vsub.s32 %v87, %v90
    %vm92 = vcmp.lt.s32.totalorder %v91, 0
    %v93 = vsub.s32 0, %v91
    %v94 = vsel %vm92, %v93, %v91
    %v95 = vclz %v94
    %v96 = vsub.s32 %v95, 2
    %vm97 = vcmp.gt.s32.totalorder 0, %v96
    %v98 = vsel %vm97, 0, %v96
    %v99 = vsub.s32 32, %v98
    %v100 = vshll.u32 %v91, %v98
    %v101 = vshrl.u32 %v83, %v99
    %v102 = vor.u32 %v100, %v101
    %v103 = vsub.s32 4294967266, %v98
    %v104 = vadd.s32 %v103, 127
    %v105 = vshll.u32 %v104, 23
    %v106 = vor.u32 4788187, %v105
    %v107 = vand.u32 2147483647, %v106
    %v109 = vcvt.s32.f32 %v102
    %v110 = vmul.f32 %v109, %v107
    %v111 = vxor.u32 %v110, 2147483648
    %v112 = vsel %vm29, %v111, %v110
    %v113 = vsub.s32 4, %v89
    %v114 = vsel %vm29, %v113, %v89
    %v115 = vsel %vm28, %v26, %v112
    %v116 = vsel %vm28, 0, %v114
    %v117 = vcosq.f32.pop %v115
    %v118 = vsinq.f32.pop %v115
    %vm119 = vweird.f32 %v26
    %v120 = vadd.s32 %v116, 3
    %v121 = vand.u32 %v120, 3
    %vm122 = vcmp.lt.s32.totalorder %v121, 2
    %vm123 = vcmp.eq.s32.totalorder %v121, 0
    %v124 = vxor.u32 %v118, 2147483648
    %v125 = vsel %vm123, %v117, %v124
    %vm126 = vcmp.eq.s32.totalorder %v121, 2
    %v127 = vxor.u32 %v117, 2147483648
    %v128 = vsel %vm126, %v127, %v118
    %v129 = vsel %vm122, %v125, %v128
    %v130 = vsel %vm119, nan, %v129
    %vm131 = vcmask 261120
    %132 = vst.msk [vmem:[#allocation2] sm:$0xff] %vm131, %v130
    // Predicated region
    $region6: #{tpu_custom_call.1} parent=1 // pred_check
      _
    $region7: #{tpu_custom_call.1} parent=1 // pred_check_branch
      %134 = sbr.rel (0) target = $region9
    $region8: #{tpu_custom_call.1} parent=1 // pred_region
      %s136 = ssub.s32 128, 128
      %137 = vsyncadd [#allocation3], %s136
      %s139 = sshll.u32 [#allocation2], 4
      %s140 = int_to_ptr.vmem [resolvable:$true] %s139
      %142 = dma.vmem_to_hbm [thread:$0]  %s140, 128, %s1, [#allocation3]
    $region9: #{tpu_custom_call.1} parent=1 // pred_fallthru
      _
    // Predicated region
    $region10: #{tpu_custom_call.1} parent=1 // pred_check
      _
    $region11: #{tpu_custom_call.1} parent=1 // pred_check_branch
      %144 = sbr.rel (0) target = $region13
    $region12: #{tpu_custom_call.1} parent=1 // pred_region
      %145 = dma.done [#allocation3], 128
    $region13: #{tpu_custom_call.1} parent=1 // pred_fallthru
      _
    %146 = vsyncpa [#allocation3], 1

</llo_original>
